<compile_context>
chip_gen: v6e
topology: v6e:2x2x1
jax: 0.10.0
libtpu: 0.0.40
codegen_flags: <defaults>
</compile_context>

<pallas_src>
import functools
import math

import jax
import jax.numpy as jnp
from jax.experimental import pallas as pl
from jax.experimental.pallas import tpu as pltpu


def _round_up(x, n):
    return (x + n - 1) // n * n


def cosface_kernel(x_ref, w_ref, o_ref, *, s_cos_m, s_sin_m, eps):
    x = x_ref[...]                      # (tm, D_pad)   raw rows
    w = w_ref[...]                      # (D_pad, tn)   raw weight columns

    # Raw operands straight into the MXU, f32 accumulation.
    acc = jnp.dot(x, w, preferred_element_type=jnp.float32)

    # Inverse L2 norms from the tiles already in VMEM (free under MXU slack):
    #   rsqrt(max(sum(v^2), 1e-24)) == 1 / max(||v||_2, 1e-12)
    # Note: with bf16 operands these norms are computed from the bf16-rounded
    # values; keep f32 operands (or pass precomputed f32 norms) if exact
    # parity with an f32 reference is required.
    xf = x.astype(jnp.float32)
    wf = w.astype(jnp.float32)
    inv_xn = jax.lax.rsqrt(
        jnp.maximum(jnp.sum(xf * xf, axis=1, keepdims=True), 1e-24))   # (tm, 1)
    inv_wn = jax.lax.rsqrt(
        jnp.maximum(jnp.sum(wf * wf, axis=0, keepdims=True), 1e-24))   # (1, tn)

    # Rank-1 post-scale -> cosine similarity; clamp; trig-identity epilogue.
    cosine = acc * inv_xn * inv_wn
    c = jnp.clip(cosine, -1.0 + eps, 1.0 - eps)
    sin_theta = jnp.sqrt(jnp.maximum(1.0 - c * c, 0.0))                # acos in [0, pi]
    o_ref[...] = (c * s_cos_m - sin_theta * s_sin_m).astype(o_ref.dtype)


@functools.partial(
    jax.jit,
    static_argnames=("s", "m", "tm", "tn", "matmul_dtype", "out_dtype"))
def cosface_forward(x, w, s, m, tm=None, tn=None,
                    matmul_dtype=None, out_dtype=jnp.float32):
    """CosFace forward: x (B, in_dim), w (in_dim, out_dim) -> (B, out_dim)."""
    B, D = x.shape
    D2, C = w.shape
    assert D == D2, "in_dim mismatch"

    mm_dtype = jnp.float32 if matmul_dtype is None else matmul_dtype
    sublane = 16 if mm_dtype == jnp.bfloat16 else 8   # packed-sublane alignment

    # ---- tile sizes (lane/sublane aligned) ----
    D_pad = _round_up(D, 128)                          # contraction dim, un-tiled
    if tn is None:
        tn = min(512, _round_up(C, 128))               # class tile (lane mult of 128)
    if tm is None:
        # Full-batch tile by default so W is streamed exactly once; cap so the
        # double-buffered tiles stay well inside v7x's 64 MiB VMEM.
        tm = min(1024, _round_up(B, sublane))
    else:
        tm = _round_up(tm, sublane)
    B_pad = _round_up(max(B, 1), tm)
    C_pad = _round_up(C, tn)

    # Zero padding changes neither norms nor dot products.
    x_p = jnp.pad(x.astype(mm_dtype), ((0, B_pad - B), (0, D_pad - D)))
    # TODO(synk): in production store W pre-padded/pre-cast to (D_pad, C_pad)
    # so this pad+cast (an extra full read+write of the largest array) leaves
    # the per-step hot path.
    w_p = jnp.pad(w.astype(mm_dtype), ((0, D_pad - D), (0, C_pad - C)))

    kernel = functools.partial(
        cosface_kernel,
        s_cos_m=float(s) * math.cos(m),
        s_sin_m=float(s) * math.sin(m),
        eps=1e-7,
    )

    n_class_tiles = C_pad // tn
    n_batch_tiles = B_pad // tm
    in_bytes = jnp.dtype(mm_dtype).itemsize
    out_bytes = jnp.dtype(out_dtype).itemsize

    # Double-buffered x + W tiles, double-buffered output tile, plus headroom;
    # capped at v7x physical VMEM (64 MiB).
    vmem_needed = (2 * (tm * D_pad + D_pad * tn) * in_bytes
                   + 2 * tm * tn * out_bytes)
    vmem_limit = int(min(max(2 * vmem_needed, 16 << 20), 64 << 20))

    out = pl.pallas_call(
        kernel,
        out_shape=jax.ShapeDtypeStruct((B_pad, C_pad), out_dtype),
        # classes outer, batch inner: W tile resident across the inner sweep.
        grid=(n_class_tiles, n_batch_tiles),
        in_specs=[
            pl.BlockSpec((tm, D_pad), lambda j, i: (i, 0)),    # x row tile
            pl.BlockSpec((D_pad, tn), lambda j, i: (0, j)),    # W col tile (outer only)
        ],
        out_specs=pl.BlockSpec((tm, tn), lambda j, i: (i, j)),
        compiler_params=pltpu.CompilerParams(
            dimension_semantics=("parallel", "parallel"),
            vmem_limit_bytes=vmem_limit),
        cost_estimate=pl.CostEstimate(
            flops=2 * B_pad * D_pad * C_pad + 8 * B_pad * C_pad,
            transcendentals=B_pad * n_class_tiles + C_pad * n_batch_tiles,
            bytes_accessed=(in_bytes * (n_class_tiles * B_pad * D_pad
                                        + D_pad * C_pad)
                            + out_bytes * B_pad * C_pad)),
    )(x_p, w_p)

    # TODO(synk): for large C, keep the logits padded and mask the padded
    # classes in the downstream loss to avoid this full-logits copy.
    return out[:B, :C]


def reference_forward(x, w, s, m):
    # Pure-JAX reference mirroring the PyTorch module.
    xn = x / jnp.maximum(jnp.linalg.norm(x, axis=1, keepdims=True), 1e-12)
    wn = w / jnp.maximum(jnp.linalg.norm(w, axis=0, keepdims=True), 1e-12)
    cosine = xn @ wn
    theta = jnp.arccos(jnp.clip(cosine, -1.0 + 1e-7, 1.0 - 1e-7))
    return s * jnp.cos(theta + m)


if __name__ == "__main__":
    key = jax.random.PRNGKey(0)
    kx, kw = jax.random.split(key)

    # Ragged small shapes to exercise padding + a multi-tile (3, 3) grid.
    B, in_dim, out_dim = 20, 40, 300
    s_param, m_param = 30.0, 0.35

    # Deterministic kaiming_uniform_-style init for W (fan_in = W.size(1)).
    gain = math.sqrt(2.0)
    bound = gain * math.sqrt(3.0 / out_dim)
    W = jax.random.uniform(kw, (in_dim, out_dim), jnp.float32, -bound, bound)
    x = jax.random.normal(kx, (B, in_dim), jnp.float32)

    # Small explicit tiles so the toy problem actually runs a tiled grid;
    # f32 operands keep a tight tolerance (use matmul_dtype=jnp.bfloat16 on
    # v6e/v7x in production).
    out = cosface_forward(x, W, s=s_param, m=m_param, tm=8, tn=128)
    out = jax.block_until_ready(out)

    ref = reference_forward(x, W, s_param, m_param)
    assert out.shape == (B, out_dim)
    assert jnp.max(jnp.abs(out - ref)) < 1e-3, "mismatch vs reference"

    print("KERNEL_OK")
</pallas_src>

<mosaic_0001>
module attributes {stable_mosaic.version = 11 : i64} {
  func.func @cosface_kernel(%arg0: i32, %arg1: i32, %arg2: memref<8x128xf32, #tpu.memory_space<vmem>>, %arg3: memref<128x128xf32, #tpu.memory_space<vmem>>, %arg4: memref<8x128xf32, #tpu.memory_space<vmem>>) attributes {dimension_semantics = [#tpu.dimension_semantics<parallel>, #tpu.dimension_semantics<parallel>], iteration_bounds = array<i64: 3, 3>, scalar_prefetch = 0 : i64, scratch_operands = 0 : i64, tpu.core_type = #tpu.core_type<tc>, window_params = [{transform_indices = @transform_0, window_bounds = array<i64: 8, 128>}, {transform_indices = @transform_1, window_bounds = array<i64: 128, 128>}, {transform_indices = @transform_2, window_bounds = array<i64: 8, 128>}]} {
    %c0 = arith.constant 0 : index
    %c0_0 = arith.constant 0 : index
    %0 = vector.load %arg2[%c0, %c0_0] : memref<8x128xf32, #tpu.memory_space<vmem>>, vector<8x128xf32>
    %c0_1 = arith.constant 0 : index
    %c0_2 = arith.constant 0 : index
    %1 = vector.load %arg3[%c0_1, %c0_2] : memref<128x128xf32, #tpu.memory_space<vmem>>, vector<128x128xf32>
    %cst = arith.constant dense<0.000000e+00> : vector<8x128xf32>
    %2 = tpu.matmul %0, %1, %cst {dimension_numbers = #tpu.dot_dimension_numbers<[1], [0], [0], [1], [0, 0, 1, 1], [], []>} : vector<8x128xf32>, vector<128x128xf32>, vector<8x128xf32> -> vector<8x128xf32>
    %3 = arith.mulf %0, %0 : vector<8x128xf32>
    %cst_3 = arith.constant dense<0.000000e+00> : vector<8xf32>
    %4 = vector.multi_reduction <add>, %3, %cst_3 [1] : vector<8x128xf32> to vector<8xf32>
    %5 = vector.shape_cast %4 : vector<8xf32> to vector<8x1xf32>
    %cst_4 = arith.constant 1.000000e-24 : f32
    %6 = vector.broadcast %cst_4 : f32 to vector<8x1xf32>
    %7 = arith.maximumf %5, %6 : vector<8x1xf32>
    %8 = math.rsqrt %7 : vector<8x1xf32>
    %9 = arith.mulf %1, %1 : vector<128x128xf32>
    %cst_5 = arith.constant dense<0.000000e+00> : vector<128xf32>
    %10 = vector.multi_reduction <add>, %9, %cst_5 [0] : vector<128x128xf32> to vector<128xf32>
    %11 = vector.shape_cast %10 : vector<128xf32> to vector<1x128xf32>
    %cst_6 = arith.constant 1.000000e-24 : f32
    %12 = vector.broadcast %cst_6 : f32 to vector<1x128xf32>
    %13 = arith.maximumf %11, %12 : vector<1x128xf32>
    %14 = math.rsqrt %13 : vector<1x128xf32>
    %15 = vector.broadcast %8 : vector<8x1xf32> to vector<8x128xf32>
    %16 = arith.mulf %2, %15 : vector<8x128xf32>
    %17 = vector.broadcast %14 : vector<1x128xf32> to vector<8x128xf32>
    %18 = arith.mulf %16, %17 : vector<8x128xf32>
    %cst_7 = arith.constant -0.99999988 : f32
    %cst_8 = arith.constant 0.99999988 : f32
    %19 = vector.broadcast %cst_7 : f32 to vector<8x128xf32>
    %20 = arith.maximumf %19, %18 : vector<8x128xf32>
    %21 = vector.broadcast %cst_8 : f32 to vector<8x128xf32>
    %22 = arith.minimumf %21, %20 : vector<8x128xf32>
    %23 = arith.mulf %22, %22 : vector<8x128xf32>
    %cst_9 = arith.constant 1.000000e+00 : f32
    %24 = vector.broadcast %cst_9 : f32 to vector<8x128xf32>
    %25 = arith.subf %24, %23 : vector<8x128xf32>
    %cst_10 = arith.constant 0.000000e+00 : f32
    %26 = vector.broadcast %cst_10 : f32 to vector<8x128xf32>
    %27 = arith.maximumf %25, %26 : vector<8x128xf32>
    %28 = math.sqrt %27 : vector<8x128xf32>
    %cst_11 = arith.constant 28.181181 : f32
    %29 = vector.broadcast %cst_11 : f32 to vector<8x128xf32>
    %30 = arith.mulf %22, %29 : vector<8x128xf32>
    %cst_12 = arith.constant 10.2869339 : f32
    %31 = vector.broadcast %cst_12 : f32 to vector<8x128xf32>
    %32 = arith.mulf %28, %31 : vector<8x128xf32>
    %33 = arith.subf %30, %32 : vector<8x128xf32>
    %c0_13 = arith.constant 0 : index
    %c0_14 = arith.constant 0 : index
    %34 = vector.load %arg4[%c0_13, %c0_14] : memref<8x128xf32, #tpu.memory_space<vmem>>, vector<8x128xf32>
    tpu.vector_store %arg4[%c0_13, %c0_14], %33 {strides = array<i32>} : memref<8x128xf32, #tpu.memory_space<vmem>>, vector<8x128xf32>,
    return
  }
  func.func @transform_0(%arg0: i32, %arg1: i32) -> (i32, i32) {
    %c0_i32 = arith.constant 0 : i32
    %c0_i32_0 = arith.constant 0 : i32
    return %arg1, %c0_i32 : i32, i32
  }
  func.func @transform_1(%arg0: i32, %arg1: i32) -> (i32, i32) {
    %c0_i32 = arith.constant 0 : i32
    %c0_i32_0 = arith.constant 0 : i32
    return %c0_i32, %arg0 : i32, i32
  }
  func.func @transform_2(%arg0: i32, %arg1: i32) -> (i32, i32) {
    %c0_i32 = arith.constant 0 : i32
    return %arg1, %arg0 : i32, i32
  }
}

</mosaic_0001>

<llo_original>
// kernel: cosface_forward.1
$region0: #{cosface_forward.1}
  #allocation0 [shape = 'u32[]', space=smem, size = 0x4, offset = 0x4, fixed_abs, tag = 'smem constant byte address 0x4 - core index']
  #allocation1 [shape = 'u32[144,128]{1,0:T(1,128)}', space=vmem, size = 0x12000, scoped, tag = 'internal scratch']
  %s0 = inlined_call_operand.vmem [shape: f32[24,128], index: 0, kind: input, shape index: {}]
  %s1 = inlined_call_operand.vmem [shape: f32[128,384], index: 1, kind: input, shape index: {}]
  %s2 = inlined_call_operand.hbm [shape: f32[24,384], index: 2, kind: output, shape index: {}]
  %s3 = sld [smem:[#allocation0]]
  $region79: #{cosface_forward.1} parent=0
    _
  %s5 = ssub.s32 1, %s3
  %s6 = scalar_select 0, %s5, %s3
  $region1: #{cosface_forward.1} parent=0
    #allocation2 [shape = 'u8[131072]{0}', space=vmem, size = 0x20000, scoped, tag = 'input window, operand 1']
    #allocation3 [shape = 'u8[8192]{0}', space=vmem, size = 0x2000, scoped, tag = 'output window, operand 0']
    #allocation4 [shape = 's32[2]{0}', space=sflag, size = 0x8, scoped, tag = 'scoped memory for cosface_forward.1']
    %7 = vsyncpa [#allocation4], 0
    %s8 = scalar_lea.sflag [#allocation4], 1
    %9 = vsyncpa %s8, 0
    loop: start=0, step=1, limit=11
    $region2: #{cosface_forward.1} parent=1 // loop_pre_header
      _
    $region3: #{cosface_forward.1} parent=1 // loop_header
      %s11 = sphi 0, %s15
      %p12 = scmp.ge.s32.totalorder %s11, 11
      %s18 = sphi 0, %s30
      %s19 = sphi 0, %s26
      %s20 = sphi 0, %s18
      %s21 = sphi 0, %s19
      %s22 = sphi 0, %s20
      %s23 = sphi 0, %s21
      %s33 = sphi 0, %s35
      %s36 = sphi 0, %s33
      %s37 = sphi 0, %s36
      %s53 = sphi 0, %s37
      %s59 = sphi 0, %s61
      %s62 = sphi 0, %s59
      %s63 = sphi 0, %s62
      %s79 = sphi 0, %s63
      %s87 = sphi 0, %s89
      %s90 = sphi 0, %s87
      %s91 = sphi 0, %s90
      %s107 = sphi 0, %s91
    $region4: #{cosface_forward.1} parent=1 // loop_header_branch
      %14 = sbr.rel (%p12) target = $region8
    $region5: #{cosface_forward.1} parent=1 // loop_body
      %s16 = ssub.s32 %s11, 1
      %s17 = ssub.s32 %s11, 2
      %s24 = sadd.s32 1, %s19
      %p25 = scmp.ge.s32.totalorder %s24, 3
      %s26 = scalar_select %p25, 0, %s24
      %s27 = sadd.s32 1, %s18
      %s28 = scalar_select %p25, %s27, %s18
      %p29 = scmp.ge.s32.totalorder %s28, 3
      %s30 = scalar_select %p29, 0, %s28
      %s31 = ssub.s32 %s19, %s26
      %p32 = scmp.eq.s32.totalorder %s31, 0
      %s34 = sadd.s32 %s33, 1
      %s35 = scalar_select %p32, %s33, %s34
      %p38 = pneg %p32
      %p39 = scmp.eq.s32.totalorder %s11, 8
      %p40 = por %p38, %p39
      %p41 = scmp.ne.s32.totalorder %s33, %s36
      %p42 = scmp.eq.s32.totalorder %s11, 0
      %p43 = por %p41, %p42
      %p44 = scmp.ne.s32.totalorder %s33, %s36
      %p45 = scmp.eq.s32.totalorder %s16, 8
      %p46 = por %p44, %p45
      %p47 = scmp.ne.s32.totalorder %s36, %s37
      %p48 = scmp.eq.s32.totalorder %s16, 0
      %p49 = por %p47, %p48
      %p50 = scmp.ne.s32.totalorder %s36, %s37
      %p51 = scmp.eq.s32.totalorder %s17, 8
      %p52 = por %p50, %p51
      %p54 = scmp.ne.s32.totalorder %s37, %s53
      %p55 = scmp.eq.s32.totalorder %s17, 0
      %p56 = por %p54, %p55
      %s57 = ssub.s32 %s18, %s30
      %p58 = scmp.eq.s32.totalorder %s57, 0
      %s60 = sadd.s32 %s59, 1
      %s61 = scalar_select %p58, %s59, %s60
      %p64 = pneg %p58
      %p65 = scmp.eq.s32.totalorder %s11, 8
      %p66 = por %p64, %p65
      %p67 = scmp.ne.s32.totalorder %s59, %s62
      %p68 = scmp.eq.s32.totalorder %s11, 0
      %p69 = por %p67, %p68
      %p70 = scmp.ne.s32.totalorder %s59, %s62
      %p71 = scmp.eq.s32.totalorder %s16, 8
      %p72 = por %p70, %p71
      %p73 = scmp.ne.s32.totalorder %s62, %s63
      %p74 = scmp.eq.s32.totalorder %s16, 0
      %p75 = por %p73, %p74
      %p76 = scmp.ne.s32.totalorder %s62, %s63
      %p77 = scmp.eq.s32.totalorder %s17, 8
      %p78 = por %p76, %p77
      %p80 = scmp.ne.s32.totalorder %s63, %s79
      %p81 = scmp.eq.s32.totalorder %s17, 0
      %p82 = por %p80, %p81
      %s83 = ssub.s32 %s19, %s26
      %s84 = ssub.s32 %s18, %s30
      %s85 = sor.u32 %s83, %s84
      %p86 = scmp.eq.s32.totalorder %s85, 0
      %s88 = sadd.s32 %s87, 1
      %s89 = scalar_select %p86, %s87, %s88
      %p92 = pneg %p86
      %p93 = scmp.eq.s32.totalorder %s11, 8
      %p94 = por %p92, %p93
      %p95 = scmp.ne.s32.totalorder %s87, %s90
      %p96 = scmp.eq.s32.totalorder %s11, 0
      %p97 = por %p95, %p96
      %p98 = scmp.ne.s32.totalorder %s87, %s90
      %p99 = scmp.eq.s32.totalorder %s16, 8
      %p100 = por %p98, %p99
      %p101 = scmp.ne.s32.totalorder %s90, %s91
      %p102 = scmp.eq.s32.totalorder %s16, 0
      %p103 = por %p101, %p102
      %p104 = scmp.ne.s32.totalorder %s90, %s91
      %p105 = scmp.eq.s32.totalorder %s17, 8
      %p106 = por %p104, %p105
      %p108 = scmp.ne.s32.totalorder %s91, %s107
      %p109 = scmp.eq.s32.totalorder %s17, 0
      %p110 = por %p108, %p109
      %p111 = scmp.le.s32.totalorder 1, %s11
      %p112 = scmp.lt.s32.totalorder %s11, 10
      %p113 = pnand %p111, %p112
      %p114 = pneg %p113
      // Predicated region
      $region9: #{cosface_forward.1} parent=5 // pred_check
        _
      $region10: #{cosface_forward.1} parent=5 // pred_check_branch
        %116 = sbr.rel (%p113) target = $region12
      $region11: #{cosface_forward.1} parent=5 // pred_region
        %s117 = ssub.s32 %s11, 1
      $region12: #{cosface_forward.1} parent=5 // pred_fallthru
        _
      %p118 = scmp.lt.s32.totalorder %s11, 9
      // Predicated region
      $region13: #{cosface_forward.1} parent=5 // pred_check
        %p119 = pneg %p118
      $region14: #{cosface_forward.1} parent=5 // pred_check_branch
        %121 = sbr.rel (%p119) target = $region16
      $region15: #{cosface_forward.1} parent=5 // pred_region
        // Predicated region
        $region17: #{cosface_forward.1} parent=15 // pred_check
          %p122 = pneg %p43
        $region18: #{cosface_forward.1} parent=15 // pred_check_branch
          %124 = sbr.rel (%p122) target = $region20
        $region19: #{cosface_forward.1} parent=15 // pred_region
          %p125 = scmp.lt.s32.totalorder %s19, 2
          %s126 = scalar_select %p125, %s19, 2
          %s127 = smul.addr %s126, 8
          %s128 = scalar_lea.vmem %s0, %s127
        $region20: #{cosface_forward.1} parent=15 // pred_fallthru
          _
        // Predicated region
        $region21: #{cosface_forward.1} parent=15 // pred_check
          %p129 = pneg %p69
        $region22: #{cosface_forward.1} parent=15 // pred_check_branch
          %131 = sbr.rel (%p129) target = $region24
        $region23: #{cosface_forward.1} parent=15 // pred_region
          %s132 = sand.u32 %s59, 1
          %s133 = sand.u32 %s59, 1
          %s134 = smul.addr %s133, 128
          %s135 = scalar_lea.vmem [#allocation2], %s134
          %s136 = smul.addr %s18, 8
          %s137 = scalar_lea.vmem %s1, %s136
          // Predicated region
          $region25: #{cosface_forward.1} parent=23 // pred_check
            _
          $region26: #{cosface_forward.1} parent=23 // pred_check_branch
            %139 = sbr.rel (0) target = $region28
          $region27: #{cosface_forward.1} parent=23 // pred_region
            // Predicated region
            $region29: #{cosface_forward.1} parent=27 // pred_check
              _
            $region30: #{cosface_forward.1} parent=27 // pred_check_branch
              %141 = sbr.rel (0) target = $region32
            $region31: #{cosface_forward.1} parent=27 // pred_region
              // Predicated region
              $region44: #{cosface_forward.1} parent=31 // pred_check
                _
              $region45: #{cosface_forward.1} parent=31 // pred_check_branch
                %187 = sbr.rel (0) target = $region47
              $region46: #{cosface_forward.1} parent=31 // pred_region
                loop: start=0, step=1, limit=1
                $region48: #{cosface_forward.1} parent=46 // loop_pre_header
                  _
                $region49: #{cosface_forward.1} parent=46 // loop_header
                  %s189 = sphi 0, %s193
                  %p190 = scmp.ge.s32.totalorder %s189, 1
                  %s194 = sphi %s137, %s137
                  %s195 = sphi %s135, %s135
                $region50: #{cosface_forward.1} parent=46 // loop_header_branch
                  %192 = sbr.rel (%p190) target = $region54
                $region51: #{cosface_forward.1} parent=46 // loop_body
                  %v196 = vld [vmem:[%s194] sm:$0xff]
                  %197 = vst [vmem:[%s195] sm:$0xff] %v196
                  %v198 = vld [vmem:[%s194 + $0x18] sm:$0xff]
                  %199 = vst [vmem:[%s195 + $0x8] sm:$0xff] %v198
                  %v200 = vld [vmem:[%s194 + $0x30] sm:$0xff]
                  %201 = vst [vmem:[%s195 + $0x10] sm:$0xff] %v200
                  %v202 = vld [vmem:[%s194 + $0x48] sm:$0xff]
                  %203 = vst [vmem:[%s195 + $0x18] sm:$0xff] %v202
                  %v204 = vld [vmem:[%s194 + $0x60] sm:$0xff]
                  %205 = vst [vmem:[%s195 + $0x20] sm:$0xff] %v204
                  %v206 = vld [vmem:[%s194 + $0x78] sm:$0xff]
                  %207 = vst [vmem:[%s195 + $0x28] sm:$0xff] %v206
                  %v208 = vld [vmem:[%s194 + $0x90] sm:$0xff]
                  %209 = vst [vmem:[%s195 + $0x30] sm:$0xff] %v208
                  %v210 = vld [vmem:[%s194 + $0xa8] sm:$0xff]
                  %211 = vst [vmem:[%s195 + $0x38] sm:$0xff] %v210
                  %v212 = vld [vmem:[%s194 + $0xc0] sm:$0xff]
                  %213 = vst [vmem:[%s195 + $0x40] sm:$0xff] %v212
                  %v214 = vld [vmem:[%s194 + $0xd8] sm:$0xff]
                  %215 = vst [vmem:[%s195 + $0x48] sm:$0xff] %v214
                  %v216 = vld [vmem:[%s194 + $0xf0] sm:$0xff]
                  %217 = vst [vmem:[%s195 + $0x50] sm:$0xff] %v216
                  %v218 = vld [vmem:[%s194 + $0x108] sm:$0xff]
                  %219 = vst [vmem:[%s195 + $0x58] sm:$0xff] %v218
                  %v220 = vld [vmem:[%s194 + $0x120] sm:$0xff]
                  %221 = vst [vmem:[%s195 + $0x60] sm:$0xff] %v220
                  %v222 = vld [vmem:[%s194 + $0x138] sm:$0xff]
                  %223 = vst [vmem:[%s195 + $0x68] sm:$0xff] %v222
                  %v224 = vld [vmem:[%s194 + $0x150] sm:$0xff]
                  %225 = vst [vmem:[%s195 + $0x70] sm:$0xff] %v224
                  %v226 = vld [vmem:[%s194 + $0x168] sm:$0xff]
                  %227 = vst [vmem:[%s195 + $0x78] sm:$0xff] %v226
                $region52: #{cosface_forward.1} parent=46 // loop_footer
                  %s193 = sadd.s32 1, %s189
                $region53: #{cosface_forward.1} parent=46 // loop_footer_branch
                  %188 = sbr.rel target = $region49
                $region54: #{cosface_forward.1} parent=46 // loop_exit
                  _
              $region47: #{cosface_forward.1} parent=31 // pred_fallthru
                _
              // Predicated region
              $region55: #{cosface_forward.1} parent=31 // pred_check
                _
              $region56: #{cosface_forward.1} parent=31 // pred_check_branch
                %229 = sbr.rel target = $region58
              $region57: #{cosface_forward.1} parent=31 // pred_region
                _
              $region58: #{cosface_forward.1} parent=31 // pred_fallthru
                _
            $region32: #{cosface_forward.1} parent=27 // pred_fallthru
              _
            // Predicated region
            $region33: #{cosface_forward.1} parent=27 // pred_check
              _
            $region34: #{cosface_forward.1} parent=27 // pred_check_branch
              %143 = sbr.rel target = $region36
            $region35: #{cosface_forward.1} parent=27 // pred_region
              %s145 = ssub.s32 256, 1
              loop: start=0, step=1, limit=1
              $region37: #{cosface_forward.1} parent=35 // loop_pre_header
                _
              $region38: #{cosface_forward.1} parent=35 // loop_header
                %s147 = sphi 0, %s151
                %p148 = scmp.ge.s32.totalorder %s147, 1
                %s152 = sphi %s137, %s137
                %s153 = sphi %s135, %s135
              $region39: #{cosface_forward.1} parent=35 // loop_header_branch
                %150 = sbr.rel (%p148) target = $region43
              $region40: #{cosface_forward.1} parent=35 // loop_body
                %v154 = vld [vmem:[%s152] sm:%s145]
                %155 = vst [vmem:[%s153] sm:%s145] %v154
                %v156 = vld [vmem:[%s152 + $0x18] sm:%s145]
                %157 = vst [vmem:[%s153 + $0x8] sm:%s145] %v156
                %v158 = vld [vmem:[%s152 + $0x30] sm:%s145]
                %159 = vst [vmem:[%s153 + $0x10] sm:%s145] %v158
                %v160 = vld [vmem:[%s152 + $0x48] sm:%s145]
                %161 = vst [vmem:[%s153 + $0x18] sm:%s145] %v160
                %v162 = vld [vmem:[%s152 + $0x60] sm:%s145]
                %163 = vst [vmem:[%s153 + $0x20] sm:%s145] %v162
                %v164 = vld [vmem:[%s152 + $0x78] sm:%s145]
                %165 = vst [vmem:[%s153 + $0x28] sm:%s145] %v164
                %v166 = vld [vmem:[%s152 + $0x90] sm:%s145]
                %167 = vst [vmem:[%s153 + $0x30] sm:%s145] %v166
                %v168 = vld [vmem:[%s152 + $0xa8] sm:%s145]
                %169 = vst [vmem:[%s153 + $0x38] sm:%s145] %v168
                %v170 = vld [vmem:[%s152 + $0xc0] sm:%s145]
                %171 = vst [vmem:[%s153 + $0x40] sm:%s145] %v170
                %v172 = vld [vmem:[%s152 + $0xd8] sm:%s145]
                %173 = vst [vmem:[%s153 + $0x48] sm:%s145] %v172
                %v174 = vld [vmem:[%s152 + $0xf0] sm:%s145]
                %175 = vst [vmem:[%s153 + $0x50] sm:%s145] %v174
                %v176 = vld [vmem:[%s152 + $0x108] sm:%s145]
                %177 = vst [vmem:[%s153 + $0x58] sm:%s145] %v176
                %v178 = vld [vmem:[%s152 + $0x120] sm:%s145]
                %179 = vst [vmem:[%s153 + $0x60] sm:%s145] %v178
                %v180 = vld [vmem:[%s152 + $0x138] sm:%s145]
                %181 = vst [vmem:[%s153 + $0x68] sm:%s145] %v180
                %v182 = vld [vmem:[%s152 + $0x150] sm:%s145]
                %183 = vst [vmem:[%s153 + $0x70] sm:%s145] %v182
                %v184 = vld [vmem:[%s152 + $0x168] sm:%s145]
                %185 = vst [vmem:[%s153 + $0x78] sm:%s145] %v184
              $region41: #{cosface_forward.1} parent=35 // loop_footer
                %s151 = sadd.s32 1, %s147
              $region42: #{cosface_forward.1} parent=35 // loop_footer_branch
                %146 = sbr.rel target = $region38
              $region43: #{cosface_forward.1} parent=35 // loop_exit
                _
            $region36: #{cosface_forward.1} parent=27 // pred_fallthru
              _
          $region28: #{cosface_forward.1} parent=23 // pred_fallthru
            _
          %230 = vnop
        $region24: #{cosface_forward.1} parent=15 // pred_fallthru
          _
      $region16: #{cosface_forward.1} parent=5 // pred_fallthru
        _
      %p231 = scmp.le.s32.totalorder 1, %s11
      %p232 = scmp.lt.s32.totalorder %s11, 10
      %p233 = pnand %p231, %p232
      %p234 = pneg %p233
      // Predicated region
      $region59: #{cosface_forward.1} parent=5 // pred_check
        _
      $region60: #{cosface_forward.1} parent=5 // pred_check_branch
        %236 = sbr.rel (%p233) target = $region62
      $region61: #{cosface_forward.1} parent=5 // pred_region
        %s237 = ssub.s32 %s11, 1
        %s238 = sand.u32 %s62, 1
        %s239 = sand.u32 %s62, 1
        %s240 = smul.addr %s239, 128
        %s241 = scalar_lea.vmem [#allocation2], %s240
        // Predicated region
        $region63: #{cosface_forward.1} parent=61 // pred_check
          %p242 = pneg %p75
        $region64: #{cosface_forward.1} parent=61 // pred_check_branch
          %244 = sbr.rel (%p242) target = $region66
        $region65: #{cosface_forward.1} parent=61 // pred_region
          _
        $region66: #{cosface_forward.1} parent=61 // pred_fallthru
          _
        %p245 = scmp.lt.s32.totalorder %s21, 2
        %s246 = scalar_select %p245, %s21, 2
        %s247 = smul.addr %s246, 8
        %s248 = scalar_lea.vmem %s0, %s247
        %p249 = pneg %p49
        %p250 = pneg %p46
        %s251 = sand.u32 %s62, 1
        %s252 = sand.u32 %s62, 1
        %s253 = smul.addr %s252, 128
        %s254 = scalar_lea.vmem [#allocation2], %s253
        %p255 = pneg %p75
        %p256 = pneg %p72
        %p257 = pneg %p103
        %p258 = pneg %p100
        %s259 = sand.u32 %s90, 1
        %s260 = scalar_lea.sflag [#allocation4], %s259
        %s261 = sand.u32 %s90, 1
        %s262 = smul.addr %s261, 8
        %s263 = scalar_lea.vmem [#allocation3], %s262
        %p264 = scmp.lt.s32.totalorder %s21, 2
        %s265 = scalar_select %p264, %s21, 2
        %s266 = smul.addr %s265, 8
        %s267 = scalar_lea.vmem %s0, %s266
        %v268 = vld [vmem:[%s267] sm:$0xff]
        %v269 = vld [vmem:[%s241] sm:$0xff]
        %v270 = vld [vmem:[%s241 + $0x8] sm:$0xff]
        %v271 = vld [vmem:[%s241 + $0x10] sm:$0xff]
        %v272 = vld [vmem:[%s241 + $0x18] sm:$0xff]
        %v273 = vld [vmem:[%s241 + $0x20] sm:$0xff]
        %v274 = vld [vmem:[%s241 + $0x28] sm:$0xff]
        %v275 = vld [vmem:[%s241 + $0x30] sm:$0xff]
        %v276 = vld [vmem:[%s241 + $0x38] sm:$0xff]
        %v277 = vld [vmem:[%s241 + $0x40] sm:$0xff]
        %v278 = vld [vmem:[%s241 + $0x48] sm:$0xff]
        %v279 = vld [vmem:[%s241 + $0x50] sm:$0xff]
        %v280 = vld [vmem:[%s241 + $0x58] sm:$0xff]
        %v281 = vld [vmem:[%s241 + $0x60] sm:$0xff]
        %v282 = vld [vmem:[%s241 + $0x68] sm:$0xff]
        %v283 = vld [vmem:[%s241 + $0x70] sm:$0xff]
        %v284 = vld [vmem:[%s241 + $0x78] sm:$0xff]
        %285 = vmatprep.subr.mxu0 0.0
        %286 = vmatpush1.msra.mxu0 %v284
        %287 = vmatprep.subr.mxu0 0.0
        %288 = vmatpush1.msra.mxu0 %v283
        %289 = vmatprep.subr.mxu0 0.0
        %290 = vmatpush1.msra.mxu0 %v282
        %291 = vmatprep.subr.mxu0 0.0
        %292 = vmatpush1.msra.mxu0 %v281
        %293 = vmatprep.subr.mxu0 0.0
        %294 = vmatpush1.msra.mxu0 %v280
        %295 = vmatprep.subr.mxu0 0.0
        %296 = vmatpush1.msra.mxu0 %v279
        %297 = vmatprep.subr.mxu0 0.0
        %298 = vmatpush1.msra.mxu0 %v278
        %299 = vmatprep.subr.mxu0 0.0
        %300 = vmatpush1.msra.mxu0 %v277
        %301 = vmatprep.subr.mxu0 0.0
        %302 = vmatpush1.msra.mxu0 %v276
        %303 = vmatprep.subr.mxu0 0.0
        %304 = vmatpush1.msra.mxu0 %v275
        %305 = vmatprep.subr.mxu0 0.0
        %306 = vmatpush1.msra.mxu0 %v274
        %307 = vmatprep.subr.mxu0 0.0
        %308 = vmatpush1.msra.mxu0 %v273
        %309 = vmatprep.subr.mxu0 0.0
        %310 = vmatpush1.msra.mxu0 %v272
        %311 = vmatprep.subr.mxu0 0.0
        %312 = vmatpush1.msra.mxu0 %v271
        %313 = vmatprep.subr.mxu0 0.0
        %314 = vmatpush1.msra.mxu0 %v270
        %315 = vmatprep.subr.mxu0 0.0
        %316 = vmatpush1.msra.mxu0 %v269
        %317 = vmatprep.subr.mxu0 0.0
        %318 = vmatpush2.msra.mxu0 0.0
        %319 = vmatprep.subr.mxu0 0.0
        %320 = vmatpush2.msra.mxu0 0.0
        %321 = vmatprep.subr.mxu0 0.0
        %322 = vmatpush2.msra.mxu0 0.0
        %323 = vmatprep.subr.mxu0 0.0
        %324 = vmatpush2.msra.mxu0 0.0
        %325 = vmatprep.subr.mxu0 0.0
        %326 = vmatpush2.msra.mxu0 0.0
        %327 = vmatprep.subr.mxu0 0.0
        %328 = vmatpush2.msra.mxu0 0.0
        %329 = vmatprep.subr.mxu0 0.0
        %330 = vmatpush2.msra.mxu0 0.0
        %331 = vmatprep.subr.mxu0 0.0
        %332 = vmatpush2.msra.mxu0 0.0
        %333 = vmatprep.subr.mxu0 0.0
        %334 = vmatpush2.msra.mxu0 0.0
        %335 = vmatprep.subr.mxu0 0.0
        %336 = vmatpush2.msra.mxu0 0.0
        %337 = vmatprep.subr.mxu0 0.0
        %338 = vmatpush2.msra.mxu0 0.0
        %339 = vmatprep.subr.mxu0 0.0
        %340 = vmatpush2.msra.mxu0 0.0
        %341 = vmatprep.subr.mxu0 0.0
        %342 = vmatpush2.msra.mxu0 0.0
        %343 = vmatprep.subr.mxu0 0.0
        %344 = vmatpush2.msra.mxu0 0.0
        %345 = vmatprep.subr.mxu0 0.0
        %346 = vmatpush2.msra.mxu0 0.0
        %347 = vmatprep.subr.mxu0 0.0
        %348 = vmatpush2.msra.mxu0 0.0
        %349 = vmatprep.mubr.f32.mxu0 0.0
        %350 = vmatmul.mubr.f32.gmra.mxu0 %v268
        %v351 = vpop.f32.mrf.mxu0
        %v352 = vadd.f32 0.0, %v351
        %v353 = vpop.f32.mrf.mxu0
        %354 = vdwg.mxu0
        %v355 = vmul.f32 %v268, %v268
        %356 = vadd.xlane.f32.xlu0 %v355
        %v357 = vpop.xlane.xlu0 %356
        %v358 = vmax.f32 %v357, 1e-24
        %v359 = vrsqrt.pop %v358
        %v360 = vmul.f32 %v269, %v269
        %v361 = vmul.f32 %v270, %v270
        %v362 = vmul.f32 %v271, %v271
        %v363 = vmul.f32 %v272, %v272
        %v364 = vmul.f32 %v273, %v273
        %v365 = vmul.f32 %v274, %v274
        %v366 = vmul.f32 %v275, %v275
        %v367 = vmul.f32 %v276, %v276
        %v368 = vmul.f32 %v277, %v277
        %v369 = vmul.f32 %v278, %v278
        %v370 = vmul.f32 %v279, %v279
        %v371 = vmul.f32 %v280, %v280
        %v372 = vmul.f32 %v281, %v281
        %v373 = vmul.f32 %v282, %v282
        %v374 = vmul.f32 %v283, %v283
        %v375 = vmul.f32 %v284, %v284
        %v376 = vadd.f32 %v360, %v361
        %v377 = vadd.f32 %v376, %v362
        %v378 = vadd.f32 %v377, %v363
        %v379 = vadd.f32 %v378, %v364
        %v380 = vadd.f32 %v379, %v365
        %v381 = vadd.f32 %v380, %v366
        %v382 = vadd.f32 %v381, %v367
        %v383 = vadd.f32 %v382, %v368
        %v384 = vadd.f32 %v383, %v369
        %v385 = vadd.f32 %v384, %v370
        %v386 = vadd.f32 %v385, %v371
        %v387 = vadd.f32 %v386, %v372
        %v388 = vadd.f32 %v387, %v373
        %v389 = vadd.f32 %v388, %v374
        %v390 = vadd.f32 %v389, %v375
        %v391 = vrot.slane %v390, 4
        %v392 = vadd.f32 %v390, %v391
        %v393 = vrot.slane %v392, 2
        %v394 = vadd.f32 %v392, %v393
        %v395 = vrot.slane %v394, 1
        %v396 = vadd.f32 %v394, %v395
        %v397 = vmax.f32 %v396, 1e-24
        %v398 = vrsqrt.pop %v397
        %v399 = vmul.f32 %v352, %v359
        %v400 = vmul.f32 %v399, %v398
        %v401 = vmax.f32 %v400, -0.9999999
        %v402 = vmin.f32 %v401, 0.9999999
        %v403 = vmul.f32 %v402, %v402
        %v404 = vsub.f32 1.0, %v403
        %v405 = vmax.f32 %v404, 0.0
        %v406 = vrsqrt.pop %v405
        %v407 = vmul.f32 %v405, %v406
        %vm408 = vcmp.eq.f32.partialorder %v405, inf
        %v409 = vsel %vm408, %v405, %v407
        %vm410 = vcmp.eq.f32.partialorder %v405, 0.0
        %v411 = vand.u32 %v405, 2147483648
        %v412 = vsel %vm410, %v411, %v409
        %v413 = vmul.f32 %v402, 28.181181
        %v414 = vmul.f32 %v412, 10.286934
        %v415 = vsub.f32 %v413, %v414
        %416 = vst [vmem:[%s263] sm:$0xff] %v415
        %s417 = sand.u32 %s90, 1
        %s418 = scalar_lea.sflag [#allocation4], %s417
        %s419 = sand.u32 %s90, 1
        %s420 = smul.addr %s419, 8
        %s421 = scalar_lea.vmem [#allocation3], %s420
        // Predicated region
        $region67: #{cosface_forward.1} parent=61 // pred_check
          %p422 = pneg %p100
        $region68: #{cosface_forward.1} parent=61 // pred_check_branch
          %424 = sbr.rel (%p422) target = $region70
        $region69: #{cosface_forward.1} parent=61 // pred_region
          %s426 = ssub.s32 128, 128
          %427 = vsyncadd %s418, %s426
          %s428 = smul.addr %s21, 3
          %s429 = sadd.s32 %s20, %s428
          %s430 = smul.addr %s429, 128
          %s431 = scalar_lea.hbm %s2, %s430
          %s433 = sshll.u32 %s421, 4
          %s434 = int_to_ptr.vmem [resolvable:$true] %s433
          %436 = dma.vmem_to_hbm [thread:$0]  %s434, 128, %s431, %s418
        $region70: #{cosface_forward.1} parent=61 // pred_fallthru
          _
      $region62: #{cosface_forward.1} parent=5 // pred_fallthru
        _
      %p437 = scmp.le.s32.totalorder 2, %s11
      // Predicated region
      $region71: #{cosface_forward.1} parent=5 // pred_check
        %p438 = pneg %p437
      $region72: #{cosface_forward.1} parent=5 // pred_check_branch
        %440 = sbr.rel (%p438) target = $region74
      $region73: #{cosface_forward.1} parent=5 // pred_region
        %s441 = ssub.s32 %s11, 2
        // Predicated region
        $region75: #{cosface_forward.1} parent=73 // pred_check
          %p442 = pneg %p106
        $region76: #{cosface_forward.1} parent=73 // pred_check_branch
          %444 = sbr.rel (%p442) target = $region78
        $region77: #{cosface_forward.1} parent=73 // pred_region
          %s445 = sand.u32 %s91, 1
          %s446 = scalar_lea.sflag [#allocation4], %s445
          %s447 = sand.u32 %s91, 1
          %s448 = smul.addr %s447, 8
          %s449 = scalar_lea.vmem [#allocation3], %s448
          %450 = dma.done %s446, 128
        $region78: #{cosface_forward.1} parent=73 // pred_fallthru
          _
      $region74: #{cosface_forward.1} parent=5 // pred_fallthru
        _
    $region6: #{cosface_forward.1} parent=1 // loop_footer
      %s15 = sadd.s32 1, %s11
    $region7: #{cosface_forward.1} parent=1 // loop_footer_branch
      %10 = sbr.rel target = $region3
    $region8: #{cosface_forward.1} parent=1 // loop_exit
      _
    %451 = vsyncpa [#allocation4], 1
    %s452 = scalar_lea.sflag [#allocation4], 1
    %453 = vsyncpa %s452, 1

</llo_original>
